<compile_context>
chip_gen: v7x
topology: tpu7x:2x2x1
jax: 0.10.0
libtpu: 0.0.40
codegen_flags: <defaults>
</compile_context>

<pallas_src>
import functools

import jax
import jax.numpy as jnp
from jax import lax
from jax.experimental import pallas as pl
from jax.experimental.pallas import tpu as pltpu


def _vmem_capacity_bytes(default=64 << 20):
    """Physical VMEM of the current TPU generation (conservative default: v7x)."""
    try:
        cap = int(pltpu.get_tpu_info().vmem_capacity_bytes)
        return cap if cap > 0 else default
    except Exception:
        return default


def _focal_ce_kernel(logits_ref, tgt_ref, out_ref, acc_ref, *,
                     gamma, alpha, smooth, num_classes, spatial, tile_r,
                     need_mask):
    """One (batch, row-tile) step.

    logits_ref: (1, C, tile_r, 128)  -- spatial positions on (sublane, lane)
    tgt_ref:    (1, 1, tile_r, 128)  -- integer class ids (any int dtype)
    out_ref:    (1, 1, 1)            -- per-batch partial loss sum
    acc_ref:    (1, 128) f32         -- single-vreg lane-parallel accumulator
    """
    r = pl.program_id(1)
    n_r = pl.num_programs(1)
    C = num_classes
    eps = 1e-07

    @pl.when(r == 0)
    def _init():
        acc_ref[...] = jnp.zeros_like(acc_ref)

    t = tgt_ref[0, 0].astype(jnp.int32)                    # (tile_r, 128)

    # Pass 1: per-position max over classes. Classes live on a leading,
    # non-tiled axis, so this is pure dense-vreg VPU work (no sublane reduce).
    # TODO(synk): for very large C (>~512) switch this static unroll to a
    # vectorized (C, tile_r, 128) formulation to bound trace size.
    m = logits_ref[0, 0].astype(jnp.float32)
    for c in range(1, C):
        m = jnp.maximum(m, logits_ref[0, c].astype(jnp.float32))

    # Pass 2: softmax denominator and the target-class numerator.
    denom = None
    e_t = None
    for c in range(C):
        ec = jnp.exp(logits_ref[0, c].astype(jnp.float32) - m)   # EUP
        denom = ec if denom is None else denom + ec
        sel = jnp.where(t == c, ec, 0.0)
        e_t = sel if e_t is None else e_t + sel

    # Exact divide: pl.reciprocal(approx=True) would not meet the 1e-5 rtol.
    p_t = e_t / denom                                       # (tile_r, 128)

    # Closed-form label smoothing: sum_c clip(onehot)_c * p_c = lo + (hi-lo)*p_t
    # (guarded for C==1, where smooth/(C-1) is undefined -- matches no-op smoothing).
    if smooth and C > 1:
        lo = smooth / (C - 1)
        hi = 1.0 - smooth
        pt = lo + (hi - lo) * p_t + eps
    else:
        pt = p_t + eps

    logpt = jnp.log(pt)
    one_minus = 1.0 - pt
    if gamma == 2.0:                                        # avoid pow -> log+exp
        focal = one_minus * one_minus
    elif gamma == 1.0:
        focal = one_minus
    elif gamma == 0.0:
        focal = jnp.ones_like(one_minus)
    else:
        focal = jnp.power(one_minus, gamma)
    loss = (-alpha) * focal * logpt                         # (tile_r, 128)

    def _accumulate(val):
        # Fold the whole tile into a single vreg before touching the
        # accumulator: one (1,128) store per step instead of tile_r/8 stores.
        acc_ref[...] += jnp.sum(val, axis=0, keepdims=True)

    if need_mask:
        # Only the last (possibly partial / padded) tile needs masking; keep
        # the iota/compare/select off the steady-state path.
        @pl.when(r == n_r - 1)
        def _last_tile():
            row = lax.broadcasted_iota(jnp.int32, (tile_r, 128), 0)
            lane = lax.broadcasted_iota(jnp.int32, (tile_r, 128), 1)
            pos = (row + r * tile_r) * 128 + lane
            # Keep this a select (NOT multiply-by-mask): it discards any
            # inf/NaN produced from garbage in out-of-range columns.
            _accumulate(jnp.where(pos < spatial, loss, 0.0))

        @pl.when(r != n_r - 1)
        def _full_tile():
            _accumulate(loss)
    else:
        _accumulate(loss)

    @pl.when(r == n_r - 1)
    def _flush():
        # Cross-lane reduce + tiny store only once per batch row.
        out_ref[...] = jnp.reshape(jnp.sum(acc_ref[...]), (1, 1, 1))


def focal_cross_entropy(inputs, targets, *, gamma=2.0, alpha=1.0, smooth=0.1,
                        reduction="mean"):
    """inputs: (B, C, H, W) float logits (f32 or bf16); targets: (B, H, W) int ids."""
    B, C, H, W = inputs.shape
    S = H * W
    N = B * S

    R = pl.cdiv(S, 128)          # number of 128-lane spatial rows
    S_pad = R * 128

    # Free views of the NCHW tensor: no transpose, no f32 materialization
    # (the f32 cast happens in-VMEM inside the kernel).
    logits = inputs.reshape(B, C, S)
    tgt = targets.reshape(B, 1, S)
    if S_pad != S:
        # One-time HBM pad copy, only when H*W isn't a multiple of 128.
        pad = S_pad - S
        logits = jnp.pad(logits, ((0, 0), (0, 0), (0, pad)))
        tgt = jnp.pad(tgt, ((0, 0), (0, 0), (0, pad)))
    # Spatial positions fill the (sublane, lane) axes; classes are a leading,
    # non-tiled axis -> no vreg padding even for C < 8.
    logits = logits.reshape(B, C, R, 128)
    tgt = tgt.reshape(B, 1, R, 128)

    itemsize = jnp.dtype(inputs.dtype).itemsize

    # Generation-aware VMEM budget: ~96 MiB scoped on v5e/v6e (128 MiB phys),
    # ~48 MiB on v7x (64 MiB phys). Block sized so double-buffered inputs plus
    # f32 intermediates stay comfortably inside the limit.
    vmem_cap = _vmem_capacity_bytes()
    vmem_limit = int(min(vmem_cap * 3 // 4, 96 << 20))
    max_block_bytes = int(min(8 << 20, vmem_limit // 8))

    row_bytes = C * 128 * itemsize               # one 128-lane spatial row of logits
    rows_fit = max(1, max_block_bytes // row_bytes)
    if R <= rows_fit or R < 32:
        tile_r = R                               # whole spatial extent per step
    else:
        tile_r = max(32, min((rows_fit // 32) * 32, (R // 32) * 32))
    n_r = pl.cdiv(R, tile_r)
    need_mask = (S_pad != S) or (R % tile_r != 0)

    kernel = functools.partial(
        _focal_ce_kernel, gamma=gamma, alpha=alpha, smooth=smooth,
        num_classes=C, spatial=S, tile_r=tile_r, need_mask=need_mask)

    # TODO(synk): on v7x with B == 1 the single 'parallel' batch axis leaves one
    # TensorCore idle; an outer spatial split of the grid would recover ~2x there.
    partials = pl.pallas_call(
        kernel,
        out_shape=jax.ShapeDtypeStruct((B, 1, 1), jnp.float32),
        grid_spec=pltpu.PrefetchScalarGridSpec(
            num_scalar_prefetch=0,
            grid=(B, n_r),
            in_specs=[
                pl.BlockSpec((1, C, tile_r, 128), lambda b, r: (b, 0, r, 0)),
                pl.BlockSpec((1, 1, tile_r, 128), lambda b, r: (b, 0, r, 0)),
            ],
            out_specs=pl.BlockSpec((1, 1, 1), lambda b, r: (b, 0, 0)),
            scratch_shapes=[pltpu.VMEM((1, 128), jnp.float32)],
        ),
        compiler_params=pltpu.CompilerParams(
            dimension_semantics=("parallel", "arbitrary"),
            vmem_limit_bytes=vmem_limit,
        ),
    )(logits, tgt)

    loss_sum = jnp.sum(partials)
    if reduction == "mean":
        return loss_sum / N
    elif reduction == "sum":
        return loss_sum
    else:
        # TODO(synk): 'none' reduction needs a per-element (B, H, W) output spec;
        # only mean/sum implemented here (module default is 'mean').
        raise NotImplementedError("reduction must be 'mean' or 'sum'")


def _reference(inputs, targets, gamma=2.0, alpha=1.0, smooth=0.1):
    B, C, H, W = inputs.shape
    eps = 1e-07
    logit = jax.nn.softmax(inputs.astype(jnp.float32), axis=1)
    logit = jnp.transpose(logit, (0, 2, 3, 1)).reshape(-1, C)
    t = targets.reshape(-1).astype(jnp.int32)
    onehot = jax.nn.one_hot(t, C, dtype=jnp.float32)
    if smooth:
        onehot = jnp.clip(onehot, smooth / (C - 1), 1.0 - smooth)
    pt = jnp.sum(onehot * logit, axis=1) + eps
    logpt = jnp.log(pt)
    loss = -alpha * jnp.power(1.0 - pt, gamma) * logpt
    return jnp.mean(loss)


if __name__ == "__main__":
    key = jax.random.PRNGKey(0)
    k1, k2, k3, k4 = jax.random.split(key, 4)

    # Case 1: module-default config, spatial extent a multiple of 128.
    B, C, H, W = 2, 4, 16, 16
    inputs = jax.random.normal(k1, (B, C, H, W), dtype=jnp.float32)
    targets = jax.random.randint(k2, (B, H, W), minval=0, maxval=C, dtype=jnp.int32)
    out = jax.block_until_ready(focal_cross_entropy(inputs, targets))
    ref = jax.block_until_ready(_reference(inputs, targets))
    assert jnp.allclose(out, ref, rtol=1e-5, atol=1e-6), (out, ref)

    # Case 2: ragged spatial extent (exercises pad + last-tile masking), smooth=0.
    B2, C2, H2, W2 = 1, 3, 5, 7
    inputs2 = jax.random.normal(k3, (B2, C2, H2, W2), dtype=jnp.float32)
    targets2 = jax.random.randint(k4, (B2, H2, W2), minval=0, maxval=C2,
                                  dtype=jnp.int32)
    out2 = jax.block_until_ready(focal_cross_entropy(inputs2, targets2, smooth=0.0))
    ref2 = jax.block_until_ready(_reference(inputs2, targets2, smooth=0.0))
    assert jnp.allclose(out2, ref2, rtol=1e-5, atol=1e-6), (out2, ref2)

    print("KERNEL_OK")
</pallas_src>

<mosaic_0001>
module attributes {stable_mosaic.version = 11 : i64} {
  func.func @_focal_ce_kernel(%arg0: i32, %arg1: i32, %arg2: memref<1x4x2x128xf32, #tpu.memory_space<vmem>>, %arg3: memref<1x1x2x128xi32, #tpu.memory_space<vmem>>, %arg4: memref<1x1x1xf32, #tpu.memory_space<vmem>>, %arg5: memref<1x128xf32, #tpu.memory_space<vmem>>) attributes {dimension_semantics = [#tpu.dimension_semantics<parallel>, #tpu.dimension_semantics<arbitrary>], iteration_bounds = array<i64: 2, 1>, scalar_prefetch = 0 : i64, scratch_operands = 1 : i64, tpu.core_type = #tpu.core_type<tc>, window_params = [{transform_indices = @transform_0, window_bounds = array<i64: 1, 4, 2, 128>}, {transform_indices = @transform_1, window_bounds = array<i64: 1, 1, 2, 128>}, {transform_indices = @transform_2, window_bounds = array<i64: 1, 1, 1>}]} {
    %c0_i32 = arith.constant 0 : i32
    %0 = arith.cmpi eq, %arg1, %c0_i32 : i32
    %1 = arith.extui %0 : i1 to i32
    %c0_i32_0 = arith.constant 0 : i32
    %2 = arith.cmpi ne, %1, %c0_i32_0 : i32
    scf.if %2 {
      %cst_49 = arith.constant 0.000000e+00 : f32
      %76 = vector.broadcast %cst_49 : f32 to vector<1x128xf32>
      %c0_50 = arith.constant 0 : index
      %c0_51 = arith.constant 0 : index
      %77 = vector.load %arg5[%c0_50, %c0_51] : memref<1x128xf32, #tpu.memory_space<vmem>>, vector<1x128xf32>
      tpu.vector_store %arg5[%c0_50, %c0_51], %76 {strides = array<i32>} : memref<1x128xf32, #tpu.memory_space<vmem>>, vector<1x128xf32>,
    } else {
    }
    %c0 = arith.constant 0 : index
    %c0_1 = arith.constant 0 : index
    %c0_2 = arith.constant 0 : index
    %c0_3 = arith.constant 0 : index
    %3 = vector.load %arg3[%c0, %c0_1, %c0_2, %c0_3] : memref<1x1x2x128xi32, #tpu.memory_space<vmem>>, vector<1x1x2x128xi32>
    %4 = vector.shape_cast %3 : vector<1x1x2x128xi32> to vector<2x128xi32>
    %c0_4 = arith.constant 0 : index
    %c0_5 = arith.constant 0 : index
    %c0_6 = arith.constant 0 : index
    %c0_7 = arith.constant 0 : index
    %5 = vector.load %arg2[%c0_4, %c0_5, %c0_6, %c0_7] : memref<1x4x2x128xf32, #tpu.memory_space<vmem>>, vector<1x1x2x128xf32>
    %6 = vector.shape_cast %5 : vector<1x1x2x128xf32> to vector<2x128xf32>
    %c0_8 = arith.constant 0 : index
    %c1 = arith.constant 1 : index
    %c0_9 = arith.constant 0 : index
    %c0_10 = arith.constant 0 : index
    %7 = vector.load %arg2[%c0_8, %c1, %c0_9, %c0_10] : memref<1x4x2x128xf32, #tpu.memory_space<vmem>>, vector<1x1x2x128xf32>
    %8 = vector.shape_cast %7 : vector<1x1x2x128xf32> to vector<2x128xf32>
    %9 = arith.maximumf %6, %8 : vector<2x128xf32>
    %c0_11 = arith.constant 0 : index
    %c2 = arith.constant 2 : index
    %c0_12 = arith.constant 0 : index
    %c0_13 = arith.constant 0 : index
    %10 = vector.load %arg2[%c0_11, %c2, %c0_12, %c0_13] : memref<1x4x2x128xf32, #tpu.memory_space<vmem>>, vector<1x1x2x128xf32>
    %11 = vector.shape_cast %10 : vector<1x1x2x128xf32> to vector<2x128xf32>
    %12 = arith.maximumf %9, %11 : vector<2x128xf32>
    %c0_14 = arith.constant 0 : index
    %c3 = arith.constant 3 : index
    %c0_15 = arith.constant 0 : index
    %c0_16 = arith.constant 0 : index
    %13 = vector.load %arg2[%c0_14, %c3, %c0_15, %c0_16] : memref<1x4x2x128xf32, #tpu.memory_space<vmem>>, vector<1x1x2x128xf32>
    %14 = vector.shape_cast %13 : vector<1x1x2x128xf32> to vector<2x128xf32>
    %15 = arith.maximumf %12, %14 : vector<2x128xf32>
    %c0_17 = arith.constant 0 : index
    %c0_18 = arith.constant 0 : index
    %c0_19 = arith.constant 0 : index
    %c0_20 = arith.constant 0 : index
    %16 = vector.load %arg2[%c0_17, %c0_18, %c0_19, %c0_20] : memref<1x4x2x128xf32, #tpu.memory_space<vmem>>, vector<1x1x2x128xf32>
    %17 = vector.shape_cast %16 : vector<1x1x2x128xf32> to vector<2x128xf32>
    %18 = arith.subf %17, %15 : vector<2x128xf32>
    %19 = math.exp %18 : vector<2x128xf32>
    %c0_i32_21 = arith.constant 0 : i32
    %20 = vector.broadcast %c0_i32_21 : i32 to vector<2x128xi32>
    %21 = arith.cmpi eq, %4, %20 : vector<2x128xi32>
    %cst = arith.constant 0.000000e+00 : f32
    %22 = vector.broadcast %cst : f32 to vector<2x128xf32>
    %23 = arith.select %21, %19, %22 : vector<2x128xi1>, vector<2x128xf32>
    %c0_22 = arith.constant 0 : index
    %c1_23 = arith.constant 1 : index
    %c0_24 = arith.constant 0 : index
    %c0_25 = arith.constant 0 : index
    %24 = vector.load %arg2[%c0_22, %c1_23, %c0_24, %c0_25] : memref<1x4x2x128xf32, #tpu.memory_space<vmem>>, vector<1x1x2x128xf32>
    %25 = vector.shape_cast %24 : vector<1x1x2x128xf32> to vector<2x128xf32>
    %26 = arith.subf %25, %15 : vector<2x128xf32>
    %27 = math.exp %26 : vector<2x128xf32>
    %28 = arith.addf %19, %27 : vector<2x128xf32>
    %c1_i32 = arith.constant 1 : i32
    %29 = vector.broadcast %c1_i32 : i32 to vector<2x128xi32>
    %30 = arith.cmpi eq, %4, %29 : vector<2x128xi32>
    %cst_26 = arith.constant 0.000000e+00 : f32
    %31 = vector.broadcast %cst_26 : f32 to vector<2x128xf32>
    %32 = arith.select %30, %27, %31 : vector<2x128xi1>, vector<2x128xf32>
    %33 = arith.addf %23, %32 : vector<2x128xf32>
    %c0_27 = arith.constant 0 : index
    %c2_28 = arith.constant 2 : index
    %c0_29 = arith.constant 0 : index
    %c0_30 = arith.constant 0 : index
    %34 = vector.load %arg2[%c0_27, %c2_28, %c0_29, %c0_30] : memref<1x4x2x128xf32, #tpu.memory_space<vmem>>, vector<1x1x2x128xf32>
    %35 = vector.shape_cast %34 : vector<1x1x2x128xf32> to vector<2x128xf32>
    %36 = arith.subf %35, %15 : vector<2x128xf32>
    %37 = math.exp %36 : vector<2x128xf32>
    %38 = arith.addf %28, %37 : vector<2x128xf32>
    %c2_i32 = arith.constant 2 : i32
    %39 = vector.broadcast %c2_i32 : i32 to vector<2x128xi32>
    %40 = arith.cmpi eq, %4, %39 : vector<2x128xi32>
    %cst_31 = arith.constant 0.000000e+00 : f32
    %41 = vector.broadcast %cst_31 : f32 to vector<2x128xf32>
    %42 = arith.select %40, %37, %41 : vector<2x128xi1>, vector<2x128xf32>
    %43 = arith.addf %33, %42 : vector<2x128xf32>
    %c0_32 = arith.constant 0 : index
    %c3_33 = arith.constant 3 : index
    %c0_34 = arith.constant 0 : index
    %c0_35 = arith.constant 0 : index
    %44 = vector.load %arg2[%c0_32, %c3_33, %c0_34, %c0_35] : memref<1x4x2x128xf32, #tpu.memory_space<vmem>>, vector<1x1x2x128xf32>
    %45 = vector.shape_cast %44 : vector<1x1x2x128xf32> to vector<2x128xf32>
    %46 = arith.subf %45, %15 : vector<2x128xf32>
    %47 = math.exp %46 : vector<2x128xf32>
    %48 = arith.addf %38, %47 : vector<2x128xf32>
    %c3_i32 = arith.constant 3 : i32
    %49 = vector.broadcast %c3_i32 : i32 to vector<2x128xi32>
    %50 = arith.cmpi eq, %4, %49 : vector<2x128xi32>
    %cst_36 = arith.constant 0.000000e+00 : f32
    %51 = vector.broadcast %cst_36 : f32 to vector<2x128xf32>
    %52 = arith.select %50, %47, %51 : vector<2x128xi1>, vector<2x128xf32>
    %53 = arith.addf %43, %52 : vector<2x128xf32>
    %54 = arith.divf %53, %48 : vector<2x128xf32>
    %cst_37 = arith.constant 0.866666674 : f32
    %55 = vector.broadcast %cst_37 : f32 to vector<2x128xf32>
    %56 = arith.mulf %55, %54 : vector<2x128xf32>
    %cst_38 = arith.constant 0.0333333351 : f32
    %57 = vector.broadcast %cst_38 : f32 to vector<2x128xf32>
    %58 = arith.addf %57, %56 : vector<2x128xf32>
    %cst_39 = arith.constant 1.000000e-07 : f32
    %59 = vector.broadcast %cst_39 : f32 to vector<2x128xf32>
    %60 = arith.addf %58, %59 : vector<2x128xf32>
    %61 = math.log %60 : vector<2x128xf32>
    %cst_40 = arith.constant 1.000000e+00 : f32
    %62 = vector.broadcast %cst_40 : f32 to vector<2x128xf32>
    %63 = arith.subf %62, %60 : vector<2x128xf32>
    %64 = arith.mulf %63, %63 : vector<2x128xf32>
    %cst_41 = arith.constant -1.000000e+00 : f32
    %65 = vector.broadcast %cst_41 : f32 to vector<2x128xf32>
    %66 = arith.mulf %65, %64 : vector<2x128xf32>
    %67 = arith.mulf %66, %61 : vector<2x128xf32>
    %c0_42 = arith.constant 0 : index
    %c0_43 = arith.constant 0 : index
    %68 = vector.load %arg5[%c0_42, %c0_43] : memref<1x128xf32, #tpu.memory_space<vmem>>, vector<1x128xf32>
    %cst_44 = arith.constant dense<0.000000e+00> : vector<128xf32>
    %69 = vector.multi_reduction <add>, %67, %cst_44 [0] : vector<2x128xf32> to vector<128xf32>
    %70 = vector.shape_cast %69 : vector<128xf32> to vector<1x128xf32>
    %71 = arith.addf %68, %70 : vector<1x128xf32>
    %c0_45 = arith.constant 0 : index
    %c0_46 = arith.constant 0 : index
    %72 = vector.load %arg5[%c0_45, %c0_46] : memref<1x128xf32, #tpu.memory_space<vmem>>, vector<1x128xf32>
    tpu.vector_store %arg5[%c0_45, %c0_46], %71 {strides = array<i32>} : memref<1x128xf32, #tpu.memory_space<vmem>>, vector<1x128xf32>,
    %c0_i32_47 = arith.constant 0 : i32
    %73 = arith.cmpi eq, %arg1, %c0_i32_47 : i32
    %74 = arith.extui %73 : i1 to i32
    %c0_i32_48 = arith.constant 0 : i32
    %75 = arith.cmpi ne, %74, %c0_i32_48 : i32
    scf.if %75 {
      %c0_49 = arith.constant 0 : index
      %c0_50 = arith.constant 0 : index
      %76 = vector.load %arg5[%c0_49, %c0_50] : memref<1x128xf32, #tpu.memory_space<vmem>>, vector<1x128xf32>
      %77 = vector.shape_cast %76 : vector<1x128xf32> to vector<1x1x128xf32>
      %cst_51 = arith.constant dense<0.000000e+00> : vector<1xf32>
      %78 = vector.multi_reduction <add>, %77, %cst_51 [1, 2] : vector<1x1x128xf32> to vector<1xf32>
      %79 = vector.shape_cast %78 : vector<1xf32> to vector<1x1x1xf32>
      %80 = vector.extract %79[0, 0, 0] : f32 from vector<1x1x1xf32>
      %81 = vector.broadcast %80 : f32 to vector<1x1x1xf32>
      %c0_52 = arith.constant 0 : index
      %c0_53 = arith.constant 0 : index
      %c0_54 = arith.constant 0 : index
      %82 = vector.load %arg4[%c0_52, %c0_53, %c0_54] : memref<1x1x1xf32, #tpu.memory_space<vmem>>, vector<1x1x1xf32>
      tpu.vector_store %arg4[%c0_52, %c0_53, %c0_54], %81 {strides = array<i32>} : memref<1x1x1xf32, #tpu.memory_space<vmem>>, vector<1x1x1xf32>,
    } else {
    }
    return
  }
  func.func @transform_0(%arg0: i32, %arg1: i32) -> (i32, i32, i32, i32) {
    %c0_i32 = arith.constant 0 : i32
    %c0_i32_0 = arith.constant 0 : i32
    %c0_i32_1 = arith.constant 0 : i32
    return %arg0, %c0_i32, %arg1, %c0_i32_0 : i32, i32, i32, i32
  }
  func.func @transform_1(%arg0: i32, %arg1: i32) -> (i32, i32, i32, i32) {
    %c0_i32 = arith.constant 0 : i32
    %c0_i32_0 = arith.constant 0 : i32
    %c0_i32_1 = arith.constant 0 : i32
    return %arg0, %c0_i32, %arg1, %c0_i32_0 : i32, i32, i32, i32
  }
  func.func @transform_2(%arg0: i32, %arg1: i32) -> (i32, i32, i32) {
    %c0_i32 = arith.constant 0 : i32
    %c0_i32_0 = arith.constant 0 : i32
    %c0_i32_1 = arith.constant 0 : i32
    return %arg0, %c0_i32, %c0_i32_0 : i32, i32, i32
  }
}

</mosaic_0001>

<llo_original>
// kernel: tpu_custom_call.1
$region0: #{tpu_custom_call.1}
  #allocation0 [shape = 'u32[]', space=smem, size = 0x4, offset = 0x4, fixed_abs, tag = 'smem constant byte address 0x4 - core index']
  #allocation1 [shape = 'u32[144,128]{1,0:T(1,128)}', space=vmem, size = 0x12000, scoped, tag = 'internal scratch']
  #allocation2 [shape = 'f32[1,128]{1,0:T(1,128)}', space=vmem, size = 0x200, scoped, tag = 'scratch operand']
  %s0 = inlined_call_operand.hbm [shape: f32[2,4,2,128], index: 0, kind: input, shape index: {}]
  %s1 = inlined_call_operand.hbm [shape: s32[2,1,2,128], index: 1, kind: input, shape index: {}]
  %s2 = inlined_call_operand.vmem [shape: f32[2,1,1], index: 2, kind: output, shape index: {}]
  %s3 = sld [smem:[#allocation0]]
  $region57: #{tpu_custom_call.1} parent=0
    _
  %s5 = ssub.s32 1, %s3
  %s6 = scalar_select 0, %s5, %s3
  $region1: #{tpu_custom_call.1} parent=0
    #allocation3 [shape = 'u8[8192]{0}', space=vmem, size = 0x2000, scoped, tag = 'input window, operand 0']
    #allocation4 [shape = 's32[2]{0}', space=sflag, size = 0x8, scoped, tag = 'scoped memory for tpu_custom_call.1']
    #allocation5 [shape = 'u8[2048]{0}', space=vmem, size = 0x800, scoped, tag = 'input window, operand 1']
    #allocation6 [shape = 's32[2]{0}', space=sflag, size = 0x8, scoped, tag = 'scoped memory for tpu_custom_call.1']
    %7 = vsyncpa [#allocation4], 0
    %s8 = scalar_lea.sflag [#allocation4], 1
    %9 = vsyncpa %s8, 0
    %10 = vsyncpa [#allocation6], 0
    %s11 = scalar_lea.sflag [#allocation6], 1
    %12 = vsyncpa %s11, 0
    loop: start=0, step=1, limit=4
    $region2: #{tpu_custom_call.1} parent=1 // loop_pre_header
      _
    $region3: #{tpu_custom_call.1} parent=1 // loop_header
      %s14 = sphi 0, %s18
      %p15 = scmp.ge.s32.totalorder %s14, 4
      %s21 = sphi 0, %s33
      %s22 = sphi 0, %s29
      %s23 = sphi 0, %s21
      %s24 = sphi 0, %s22
      %s25 = sphi 0, %s23
      %s26 = sphi 0, %s24
      %s38 = sphi 0, %s40
      %s41 = sphi 0, %s38
      %s42 = sphi 0, %s41
      %s58 = sphi 0, %s42
      %s66 = sphi 0, %s68
      %s69 = sphi 0, %s66
      %s70 = sphi 0, %s69
      %s86 = sphi 0, %s70
      %s92 = sphi 0, %s94
      %s95 = sphi 0, %s92
      %s96 = sphi 0, %s95
      %s112 = sphi 0, %s96
    $region4: #{tpu_custom_call.1} parent=1 // loop_header_branch
      %17 = sbr.rel (%p15) target = $region8
    $region5: #{tpu_custom_call.1} parent=1 // loop_body
      %s19 = ssub.s32 %s14, 1
      %s20 = ssub.s32 %s14, 2
      %s27 = sadd.s32 1, %s22
      %p28 = scmp.ge.s32.totalorder %s27, 1
      %s29 = scalar_select %p28, 0, %s27
      %s30 = sadd.s32 1, %s21
      %s31 = scalar_select %p28, %s30, %s21
      %p32 = scmp.ge.s32.totalorder %s31, 2
      %s33 = scalar_select %p32, 0, %s31
      %s34 = ssub.s32 %s21, %s33
      %s35 = ssub.s32 %s22, %s29
      %s36 = sor.u32 %s34, %s35
      %p37 = scmp.eq.s32.totalorder %s36, 0
      %s39 = sadd.s32 %s38, 1
      %s40 = scalar_select %p37, %s38, %s39
      %p43 = pneg %p37
      %p44 = scmp.eq.s32.totalorder %s14, 1
      %p45 = por %p43, %p44
      %p46 = scmp.ne.s32.totalorder %s38, %s41
      %p47 = scmp.eq.s32.totalorder %s14, 0
      %p48 = por %p46, %p47
      %p49 = scmp.ne.s32.totalorder %s38, %s41
      %p50 = scmp.eq.s32.totalorder %s19, 1
      %p51 = por %p49, %p50
      %p52 = scmp.ne.s32.totalorder %s41, %s42
      %p53 = scmp.eq.s32.totalorder %s19, 0
      %p54 = por %p52, %p53
      %p55 = scmp.ne.s32.totalorder %s41, %s42
      %p56 = scmp.eq.s32.totalorder %s20, 1
      %p57 = por %p55, %p56
      %p59 = scmp.ne.s32.totalorder %s42, %s58
      %p60 = scmp.eq.s32.totalorder %s20, 0
      %p61 = por %p59, %p60
      %s62 = ssub.s32 %s21, %s33
      %s63 = ssub.s32 %s22, %s29
      %s64 = sor.u32 %s62, %s63
      %p65 = scmp.eq.s32.totalorder %s64, 0
      %s67 = sadd.s32 %s66, 1
      %s68 = scalar_select %p65, %s66, %s67
      %p71 = pneg %p65
      %p72 = scmp.eq.s32.totalorder %s14, 1
      %p73 = por %p71, %p72
      %p74 = scmp.ne.s32.totalorder %s66, %s69
      %p75 = scmp.eq.s32.totalorder %s14, 0
      %p76 = por %p74, %p75
      %p77 = scmp.ne.s32.totalorder %s66, %s69
      %p78 = scmp.eq.s32.totalorder %s19, 1
      %p79 = por %p77, %p78
      %p80 = scmp.ne.s32.totalorder %s69, %s70
      %p81 = scmp.eq.s32.totalorder %s19, 0
      %p82 = por %p80, %p81
      %p83 = scmp.ne.s32.totalorder %s69, %s70
      %p84 = scmp.eq.s32.totalorder %s20, 1
      %p85 = por %p83, %p84
      %p87 = scmp.ne.s32.totalorder %s70, %s86
      %p88 = scmp.eq.s32.totalorder %s20, 0
      %p89 = por %p87, %p88
      %s90 = ssub.s32 %s21, %s33
      %p91 = scmp.eq.s32.totalorder %s90, 0
      %s93 = sadd.s32 %s92, 1
      %s94 = scalar_select %p91, %s92, %s93
      %p97 = pneg %p91
      %p98 = scmp.eq.s32.totalorder %s14, 1
      %p99 = por %p97, %p98
      %p100 = scmp.ne.s32.totalorder %s92, %s95
      %p101 = scmp.eq.s32.totalorder %s14, 0
      %p102 = por %p100, %p101
      %p103 = scmp.ne.s32.totalorder %s92, %s95
      %p104 = scmp.eq.s32.totalorder %s19, 1
      %p105 = por %p103, %p104
      %p106 = scmp.ne.s32.totalorder %s95, %s96
      %p107 = scmp.eq.s32.totalorder %s19, 0
      %p108 = por %p106, %p107
      %p109 = scmp.ne.s32.totalorder %s95, %s96
      %p110 = scmp.eq.s32.totalorder %s20, 1
      %p111 = por %p109, %p110
      %p113 = scmp.ne.s32.totalorder %s96, %s112
      %p114 = scmp.eq.s32.totalorder %s20, 0
      %p115 = por %p113, %p114
      %p116 = scmp.le.s32.totalorder 1, %s14
      %p117 = scmp.lt.s32.totalorder %s14, 3
      %p118 = pnand %p116, %p117
      %p119 = pneg %p118
      // Predicated region
      $region9: #{tpu_custom_call.1} parent=5 // pred_check
        _
      $region10: #{tpu_custom_call.1} parent=5 // pred_check_branch
        %121 = sbr.rel (%p118) target = $region12
      $region11: #{tpu_custom_call.1} parent=5 // pred_region
        %s122 = ssub.s32 %s14, 1
      $region12: #{tpu_custom_call.1} parent=5 // pred_fallthru
        _
      %p123 = scmp.lt.s32.totalorder %s14, 2
      // Predicated region
      $region13: #{tpu_custom_call.1} parent=5 // pred_check
        %p124 = pneg %p123
      $region14: #{tpu_custom_call.1} parent=5 // pred_check_branch
        %126 = sbr.rel (%p124) target = $region16
      $region15: #{tpu_custom_call.1} parent=5 // pred_region
        // Predicated region
        $region17: #{tpu_custom_call.1} parent=15 // pred_check
          %p127 = pneg %p48
        $region18: #{tpu_custom_call.1} parent=15 // pred_check_branch
          %129 = sbr.rel (%p127) target = $region20
        $region19: #{tpu_custom_call.1} parent=15 // pred_region
          %s130 = sand.u32 %s38, 1
          %s131 = scalar_lea.sflag [#allocation4], %s130
          %s132 = sand.u32 %s38, 1
          %s133 = smul.addr %s132, 8
          %s134 = scalar_lea.vmem [#allocation3], %s133
          %s136 = ssub.s32 128, 128
          %137 = vsyncadd %s131, %s136
          %s138 = smul.addr %s21, 4
          %s139 = sadd.s32 %s22, %s138
          %s140 = smul.addr %s139, 32
          %s141 = scalar_lea.hbm %s0, %s140
          %s142 = sshll.u32 %s134, 4
          %s143 = int_to_ptr.vmem [resolvable:$true] %s142
          %148 = dma.hbm_to_vmem [thread:$0]  %s141, 128, %s143, %s131, 32, 32, 2
        $region20: #{tpu_custom_call.1} parent=15 // pred_fallthru
          _
        // Predicated region
        $region21: #{tpu_custom_call.1} parent=15 // pred_check
          %p149 = pneg %p76
        $region22: #{tpu_custom_call.1} parent=15 // pred_check_branch
          %151 = sbr.rel (%p149) target = $region24
        $region23: #{tpu_custom_call.1} parent=15 // pred_region
          %s152 = sand.u32 %s66, 1
          %s153 = scalar_lea.sflag [#allocation6], %s152
          %s154 = sand.u32 %s66, 1
          %s155 = smul.addr %s154, 2
          %s156 = scalar_lea.vmem [#allocation5], %s155
          %s158 = ssub.s32 32, 32
          %159 = vsyncadd %s153, %s158
          %s160 = sadd.s32 %s22, %s21
          %s161 = smul.addr %s160, 32
          %s162 = scalar_lea.hbm %s1, %s161
          %s164 = sshll.u32 %s156, 4
          %s165 = int_to_ptr.vmem [resolvable:$true] %s164
          %167 = dma.hbm_to_vmem [thread:$0]  %s162, 32, %s165, %s153
        $region24: #{tpu_custom_call.1} parent=15 // pred_fallthru
          _
      $region16: #{tpu_custom_call.1} parent=5 // pred_fallthru
        _
      %p168 = scmp.le.s32.totalorder 1, %s14
      %p169 = scmp.lt.s32.totalorder %s14, 3
      %p170 = pnand %p168, %p169
      %p171 = pneg %p170
      // Predicated region
      $region25: #{tpu_custom_call.1} parent=5 // pred_check
        _
      $region26: #{tpu_custom_call.1} parent=5 // pred_check_branch
        %173 = sbr.rel (%p170) target = $region28
      $region27: #{tpu_custom_call.1} parent=5 // pred_region
        %s174 = ssub.s32 %s14, 1
        %s175 = sand.u32 %s41, 1
        %s176 = scalar_lea.sflag [#allocation4], %s175
        %s177 = sand.u32 %s41, 1
        %s178 = smul.addr %s177, 8
        %s179 = scalar_lea.vmem [#allocation3], %s178
        // Predicated region
        $region29: #{tpu_custom_call.1} parent=27 // pred_check
          %p180 = pneg %p54
        $region30: #{tpu_custom_call.1} parent=27 // pred_check_branch
          %182 = sbr.rel (%p180) target = $region32
        $region31: #{tpu_custom_call.1} parent=27 // pred_region
          %183 = dma.done %s176, 128
        $region32: #{tpu_custom_call.1} parent=27 // pred_fallthru
          _
        %s184 = sand.u32 %s69, 1
        %s185 = scalar_lea.sflag [#allocation6], %s184
        %s186 = sand.u32 %s69, 1
        %s187 = smul.addr %s186, 2
        %s188 = scalar_lea.vmem [#allocation5], %s187
        // Predicated region
        $region33: #{tpu_custom_call.1} parent=27 // pred_check
          %p189 = pneg %p82
        $region34: #{tpu_custom_call.1} parent=27 // pred_check_branch
          %191 = sbr.rel (%p189) target = $region36
        $region35: #{tpu_custom_call.1} parent=27 // pred_region
          %192 = dma.done %s185, 32
        $region36: #{tpu_custom_call.1} parent=27 // pred_fallthru
          _
        %s193 = sand.u32 %s41, 1
        %s194 = scalar_lea.sflag [#allocation4], %s193
        %s195 = sand.u32 %s41, 1
        %s196 = smul.addr %s195, 8
        %s197 = scalar_lea.vmem [#allocation3], %s196
        %p198 = pneg %p54
        %p199 = pneg %p51
        %s200 = sand.u32 %s69, 1
        %s201 = scalar_lea.sflag [#allocation6], %s200
        %s202 = sand.u32 %s69, 1
        %s203 = smul.addr %s202, 2
        %s204 = scalar_lea.vmem [#allocation5], %s203
        %p205 = pneg %p82
        %p206 = pneg %p79
        %p207 = pneg %p108
        %p208 = pneg %p105
        %p209 = scmp.lt.s32.totalorder %s23, 1
        %s210 = scalar_select %p209, %s23, 1
        %s211 = scalar_lea.vmem %s2, %s210
        %p212 = scmp.lt.s32.totalorder %s23, 1
        %s213 = scalar_select %p212, %s23, 1
        %s214 = scalar_lea.vmem %s2, %s213
        %p215 = scmp.eq.s32.totalorder %s24, 0
        // Predicated region
        $region37: #{tpu_custom_call.1} parent=27 // pred_check
          %p216 = pneg %p215
        $region38: #{tpu_custom_call.1} parent=27 // pred_check_branch
          %218 = sbr.rel (%p216) target = $region40
        $region39: #{tpu_custom_call.1} parent=27 // pred_region
          %219 = vst [vmem:[#allocation2] sm:$0x1] 0.0
        $region40: #{tpu_custom_call.1} parent=27 // pred_fallthru
          _
        %v220 = vld [vmem:[%s188] sm:$0x3]
        %v221 = vld [vmem:[%s179] sm:$0x3]
        %s222 = scalar_lea.vmem %s179, 2 [#allocation3]
        %v223 = vld [vmem:[%s222] sm:$0x3]
        %v224 = vmax.f32 %v221, %v223
        %s225 = scalar_lea.vmem %s179, 4 [#allocation3]
        %v226 = vld [vmem:[%s225] sm:$0x3]
        %v227 = vmax.f32 %v224, %v226
        %s228 = scalar_lea.vmem %s179, 6 [#allocation3]
        %v229 = vld [vmem:[%s228] sm:$0x3]
        %v230 = vmax.f32 %v227, %v229
        %v231 = vsub.f32 %v221, %v230
        %v232 = vmul.f32 %v231, 1.442695
        %v233 = vpow.pop %v232
        %vm234 = vcmp.eq.s32.totalorder %v220, 0
        %v235 = vsel %vm234, %v233, 0.0
        %v236 = vsub.f32 %v223, %v230
        %v237 = vmul.f32 %v236, 1.442695
        %v238 = vpow.pop %v237
        %v239 = vadd.f32 %v233, %v238
        %vm240 = vcmp.eq.s32.totalorder %v220, 1
        %v241 = vsel %vm240, %v238, 0.0
        %v242 = vadd.f32 %v235, %v241
        %v243 = vsub.f32 %v226, %v230
        %v244 = vmul.f32 %v243, 1.442695
        %v245 = vpow.pop %v244
        %v246 = vadd.f32 %v239, %v245
        %vm247 = vcmp.eq.s32.totalorder %v220, 2
        %v248 = vsel %vm247, %v245, 0.0
        %v249 = vadd.f32 %v242, %v248
        %v250 = vsub.f32 %v229, %v230
        %v251 = vmul.f32 %v250, 1.442695
        %v252 = vpow.pop %v251
        %v253 = vadd.f32 %v246, %v252
        %vm254 = vcmp.eq.s32.totalorder %v220, 3
        %v255 = vsel %vm254, %v252, 0.0
        %v256 = vadd.f32 %v249, %v255
        %v257 = vrcp.pop %v253
        %v258 = vmul.f32 %v256, %v257
        %v259 = vmul.f32 %v258, 0.8666667
        %v260 = vadd.f32 %v259, 0.033333335
        %v261 = vadd.f32 %v260, 1e-07
        %v262 = vlog2.pop %v261
        %v263 = vmul.f32 %v262, 0.6931472
        %v264 = vsub.f32 1.0, %v261
        %v265 = vmul.f32 %v264, %v264
        %v266 = vmul.f32 %v265, -1.0
        %v267 = vmul.f32 %v266, %v263
        %v268 = vld [vmem:[#allocation2] sm:$0x1]
        %vm269 = vcmask 1041408
        %v270 = vsel %vm269, %v267, 0.0
        %v271 = vrot.slane %v270, 4
        %v272 = vadd.f32 %v270, %v271
        %v273 = vrot.slane %v272, 2
        %v274 = vadd.f32 %v272, %v273
        %v275 = vrot.slane %v274, 1
        %v276 = vadd.f32 %v274, %v275
        %v277 = vadd.f32 %v268, %v276
        %278 = vst [vmem:[#allocation2] sm:$0x1] %v277
        // Predicated region
        $region41: #{tpu_custom_call.1} parent=27 // pred_check
          %p279 = pneg %p215
        $region42: #{tpu_custom_call.1} parent=27 // pred_check_branch
          %281 = sbr.rel (%p279) target = $region44
        $region43: #{tpu_custom_call.1} parent=27 // pred_region
          %v282 = vld [vmem:[#allocation2] sm:$0x1]
          %vm283 = vcmask 1040384
          %v284 = vsel %vm283, %v282, 0.0
          %285 = vadd.xlane.f32.xlu0 %v284
          %v286 = vpop.xlane.xlu0 %285
          %v287 = vrot.slane %v286, 4
          %v288 = vadd.f32 %v286, %v287
          %v289 = vrot.slane %v288, 2
          %v290 = vadd.f32 %v288, %v289
          %v291 = vrot.slane %v290, 1
          %v292 = vadd.f32 %v290, %v291
          %s293 = vtos %v292
          %v294 = vstv %s293
          %vm295 = vcmask 0
          %296 = vst.msk [vmem:[%s214] sm:$0x1] %vm295, %v294
        $region44: #{tpu_custom_call.1} parent=27 // pred_fallthru
          _
        %p297 = scmp.lt.s32.totalorder %s23, 1
        %s298 = scalar_select %p297, %s23, 1
        %s299 = scalar_lea.vmem %s2, %s298
        // Predicated region
        $region45: #{tpu_custom_call.1} parent=27 // pred_check
          %p300 = pneg %p105
        $region46: #{tpu_custom_call.1} parent=27 // pred_check_branch
          %302 = sbr.rel (%p300) target = $region48
        $region47: #{tpu_custom_call.1} parent=27 // pred_region
          _
        $region48: #{tpu_custom_call.1} parent=27 // pred_fallthru
          _
      $region28: #{tpu_custom_call.1} parent=5 // pred_fallthru
        _
      %p303 = scmp.le.s32.totalorder 2, %s14
      // Predicated region
      $region49: #{tpu_custom_call.1} parent=5 // pred_check
        %p304 = pneg %p303
      $region50: #{tpu_custom_call.1} parent=5 // pred_check_branch
        %306 = sbr.rel (%p304) target = $region52
      $region51: #{tpu_custom_call.1} parent=5 // pred_region
        %s307 = ssub.s32 %s14, 2
        // Predicated region
        $region53: #{tpu_custom_call.1} parent=51 // pred_check
          %p308 = pneg %p111
        $region54: #{tpu_custom_call.1} parent=51 // pred_check_branch
          %310 = sbr.rel (%p308) target = $region56
        $region55: #{tpu_custom_call.1} parent=51 // pred_region
          %p311 = scmp.lt.s32.totalorder %s25, 1
          %s312 = scalar_select %p311, %s25, 1
          %s313 = scalar_lea.vmem %s2, %s312
        $region56: #{tpu_custom_call.1} parent=51 // pred_fallthru
          _
      $region52: #{tpu_custom_call.1} parent=5 // pred_fallthru
        _
    $region6: #{tpu_custom_call.1} parent=1 // loop_footer
      %s18 = sadd.s32 1, %s14
    $region7: #{tpu_custom_call.1} parent=1 // loop_footer_branch
      %13 = sbr.rel target = $region3
    $region8: #{tpu_custom_call.1} parent=1 // loop_exit
      _
    %314 = vsyncpa [#allocation4], 1
    %s315 = scalar_lea.sflag [#allocation4], 1
    %316 = vsyncpa %s315, 1
    %317 = vsyncpa [#allocation6], 1
    %s318 = scalar_lea.sflag [#allocation6], 1
    %319 = vsyncpa %s318, 1

</llo_original>
